<compile_context>
chip_gen: v7x
topology: tpu7x:2x2x1
jax: 0.10.0
libtpu: 0.0.40
codegen_flags: <defaults>
</compile_context>

<pallas_src>
import functools

import jax
import jax.numpy as jnp
from jax.experimental import pallas as pl
from jax.experimental.pallas import tpu as pltpu


def _round_up(x, m):
    return (x + m - 1) // m * m


def logreg_kernel(x_ref, w_ref, b_ref, o_ref, *, matmul_dtype):
    x = x_ref[...]
    w = w_ref[...]
    if matmul_dtype is not None:
        # Opt-in MXU low-precision path (bf16 operands, f32 accumulation).
        x = x.astype(matmul_dtype)
        w = w.astype(matmul_dtype)
    scores = jnp.dot(x, w, preferred_element_type=jnp.float32)
    scores = scores + b_ref[...].astype(jnp.float32)

    # Numerically stable row softmax (dim=1), all in f32.  Exact division:
    # the kernel is HBM-bound, so the divide is hidden under the DMA and
    # keeps rows summing to 1 to f32 precision.
    m = jnp.max(scores, axis=1, keepdims=True)
    e = jnp.exp(scores - m)
    denom = jnp.sum(e, axis=1, keepdims=True)
    # TODO(synk): for small C (<128 lanes) the output store is a masked
    # vst.msk; a lane-dense repack (block-diagonal W, k samples per 128-lane
    # row) would unmask it without inflating HBM bytes, but the kernel is
    # HBM/step-overhead bound so it is not worth the complexity here.
    o_ref[...] = (e / denom).astype(o_ref.dtype)


def pt_logreg_forward(x, w, b, *, tile_n=None, matmul_dtype=None,
                      out_dtype=jnp.float32):
    """Fused X@W + b -> softmax Pallas kernel.

    x: (N, D) float32 or bfloat16   w: (D, C) float32   b: (C,) float32
    returns probs: (N, C) `out_dtype`
    """
    N, D = x.shape
    D2, C = w.shape
    assert D == D2
    b2d = b.reshape(1, C).astype(jnp.float32)

    x_itemsize = jnp.dtype(x.dtype).itemsize
    w_itemsize = jnp.dtype(w.dtype).itemsize
    out_itemsize = jnp.dtype(out_dtype).itemsize

    # Lane-padded per-tile sizes: in VMEM the last dim pads to 128 lanes.
    D_pad = _round_up(D, 128)
    C_pad = _round_up(C, 128)

    # --- Batch tile selection (lane-padded VMEM budget) -----------------------
    auto_tile = tile_n is None
    if auto_tile:
        # Budget ~24 MiB for the double-buffered X + out tiles: comfortably
        # inside v7x's 64 MiB VMEM (and v5e/v6e's 128 MiB) with room left for
        # the resident W/b and compiler scratch.
        budget = 24 << 20
        bytes_per_row = 2 * (D_pad * x_itemsize + C_pad * out_itemsize)
        tile_n = min(8192, budget // bytes_per_row)
    tile_n = int(tile_n)
    # Multiple of 16 so a bf16 X (16-row sublane packing) still tiles cleanly;
    # never bigger than the (rounded) batch.
    tile_n = max(16, min(_round_up(tile_n, 16), _round_up(N, 16)))
    if auto_tile:
        # Keep >=2 grid steps when the batch allows, so the "parallel" axis
        # can be sharded across both v7x TensorCores.
        tile_n = min(tile_n, max(16, _round_up(pl.cdiv(N, 2), 16)))

    grid = (pl.cdiv(N, tile_n),)  # partial last block handled by Pallas

    # --- Explicit VMEM budget (lane-padded, double-buffered X + out) ---------
    bytes_x = 2 * tile_n * D_pad * x_itemsize
    bytes_o = 2 * tile_n * C_pad * out_itemsize
    bytes_wb = _round_up(D, 8) * C_pad * w_itemsize + 8 * C_pad * 4
    vmem_limit = bytes_x + bytes_o + bytes_wb + (4 << 20)   # + headroom
    vmem_limit = min(max(vmem_limit, 16 << 20), 48 << 20)   # safe on v5e..v7x

    kernel = functools.partial(logreg_kernel, matmul_dtype=matmul_dtype)

    out = pl.pallas_call(
        kernel,
        out_shape=jax.ShapeDtypeStruct((N, C), out_dtype),
        grid_spec=pltpu.PrefetchScalarGridSpec(
            num_scalar_prefetch=0,
            grid=grid,
            in_specs=[
                pl.BlockSpec((tile_n, D), lambda i: (i, 0)),  # X tile (streamed)
                pl.BlockSpec((D, C), lambda i: (0, 0)),       # W (resident)
                pl.BlockSpec((1, C), lambda i: (0, 0)),       # b (resident)
            ],
            out_specs=pl.BlockSpec((tile_n, C), lambda i: (i, 0)),
        ),
        compiler_params=pltpu.CompilerParams(
            dimension_semantics=("parallel",),   # megacore-shardable batch axis
            vmem_limit_bytes=vmem_limit,
        ),
    )(x, w, b2d)

    return out


if __name__ == "__main__":
    # Shapes implied by the module: X (N, D), W (D, C), b (C,)
    N, D, C = 8, 32, 16

    key = jax.random.PRNGKey(0)
    kx, kw = jax.random.split(key)
    x = jax.random.normal(kx, (N, D), dtype=jnp.float32)
    w = jax.random.normal(kw, (D, C), dtype=jnp.float32)  # ~ randn(D, C)
    b = jnp.zeros((C,), dtype=jnp.float32)                # zeros(C)

    # --- Case 1: tiny batch, exact f32 parity with the PyTorch module -------
    probs = jax.block_until_ready(pt_logreg_forward(x, w, b))
    ref = jax.nn.softmax(
        jnp.dot(x, w, preferred_element_type=jnp.float32) + b, axis=1)
    assert probs.shape == (N, C)
    assert jnp.allclose(probs, ref, atol=1e-5, rtol=1e-5)
    assert jnp.allclose(jnp.sum(probs, axis=1), 1.0, atol=1e-5)

    # --- Case 2: non-divisible batch -> partial last block + >=2 grid steps -
    N2 = 100
    x2 = jax.random.normal(jax.random.PRNGKey(1), (N2, D), dtype=jnp.float32)
    probs2 = jax.block_until_ready(pt_logreg_forward(x2, w, b))
    ref2 = jax.nn.softmax(
        jnp.dot(x2, w, preferred_element_type=jnp.float32) + b, axis=1)
    assert probs2.shape == (N2, C)
    assert jnp.allclose(probs2, ref2, atol=1e-5, rtol=1e-5)
    assert jnp.allclose(jnp.sum(probs2, axis=1), 1.0, atol=1e-5)

    # --- Case 3: bf16 activation stream (opt-in), looser tolerance ----------
    x3 = x2.astype(jnp.bfloat16)
    probs3 = jax.block_until_ready(
        pt_logreg_forward(x3, w, b, tile_n=16, matmul_dtype=jnp.bfloat16))
    assert probs3.shape == (N2, C)
    assert jnp.allclose(probs3, ref2, atol=5e-2, rtol=5e-2)
    assert jnp.allclose(jnp.sum(probs3, axis=1), 1.0, atol=1e-3)

    print("KERNEL_OK")
</pallas_src>

<mosaic_0001>
module attributes {stable_mosaic.version = 11 : i64} {
  func.func @logreg_kernel(%arg0: i32, %arg1: memref<16x32xf32, #tpu.memory_space<vmem>>, %arg2: memref<32x16xf32, #tpu.memory_space<vmem>>, %arg3: memref<1x16xf32, #tpu.memory_space<vmem>>, %arg4: memref<16x16xf32, #tpu.memory_space<vmem>>) attributes {dimension_semantics = [#tpu.dimension_semantics<parallel>], iteration_bounds = array<i64: 1>, scalar_prefetch = 0 : i64, scratch_operands = 0 : i64, tpu.core_type = #tpu.core_type<tc>, window_params = [{transform_indices = @transform_0, window_bounds = array<i64: 16, 32>}, {pipeline_mode = #tpu.pipeline_mode<synchronous>, transform_indices = @transform_1, window_bounds = array<i64: 32, 16>}, {pipeline_mode = #tpu.pipeline_mode<synchronous>, transform_indices = @transform_2, window_bounds = array<i64: 1, 16>}, {transform_indices = @transform_3, window_bounds = array<i64: 16, 16>}]} {
    %c0 = arith.constant 0 : index
    %c0_0 = arith.constant 0 : index
    %0 = vector.load %arg1[%c0, %c0_0] : memref<16x32xf32, #tpu.memory_space<vmem>>, vector<16x32xf32>
    %c0_1 = arith.constant 0 : index
    %c0_2 = arith.constant 0 : index
    %1 = vector.load %arg2[%c0_1, %c0_2] : memref<32x16xf32, #tpu.memory_space<vmem>>, vector<32x16xf32>
    %cst = arith.constant dense<0.000000e+00> : vector<16x16xf32>
    %2 = tpu.matmul %0, %1, %cst {dimension_numbers = #tpu.dot_dimension_numbers<[1], [0], [0], [1], [0, 0, 1, 1], [], []>} : vector<16x32xf32>, vector<32x16xf32>, vector<16x16xf32> -> vector<16x16xf32>
    %c0_3 = arith.constant 0 : index
    %c0_4 = arith.constant 0 : index
    %3 = vector.load %arg3[%c0_3, %c0_4] : memref<1x16xf32, #tpu.memory_space<vmem>>, vector<1x16xf32>
    %4 = vector.broadcast %3 : vector<1x16xf32> to vector<16x16xf32>
    %5 = arith.addf %2, %4 : vector<16x16xf32>
    %cst_5 = arith.constant dense<0xFF800000> : vector<16xf32>
    %6 = vector.multi_reduction <maximumf>, %5, %cst_5 [1] : vector<16x16xf32> to vector<16xf32>
    %7 = vector.shape_cast %6 : vector<16xf32> to vector<16x1xf32>
    %8 = vector.broadcast %7 : vector<16x1xf32> to vector<16x16xf32>
    %9 = arith.subf %5, %8 : vector<16x16xf32>
    %10 = math.exp %9 : vector<16x16xf32>
    %cst_6 = arith.constant dense<0.000000e+00> : vector<16xf32>
    %11 = vector.multi_reduction <add>, %10, %cst_6 [1] : vector<16x16xf32> to vector<16xf32>
    %12 = vector.shape_cast %11 : vector<16xf32> to vector<16x1xf32>
    %13 = vector.broadcast %12 : vector<16x1xf32> to vector<16x16xf32>
    %14 = arith.divf %10, %13 : vector<16x16xf32>
    %c0_7 = arith.constant 0 : index
    %c0_8 = arith.constant 0 : index
    %15 = vector.load %arg4[%c0_7, %c0_8] : memref<16x16xf32, #tpu.memory_space<vmem>>, vector<16x16xf32>
    tpu.vector_store %arg4[%c0_7, %c0_8], %14 {strides = array<i32>} : memref<16x16xf32, #tpu.memory_space<vmem>>, vector<16x16xf32>,
    return
  }
  func.func @transform_0(%arg0: i32) -> (i32, i32) {
    %c0_i32 = arith.constant 0 : i32
    %c0_i32_0 = arith.constant 0 : i32
    return %arg0, %c0_i32 : i32, i32
  }
  func.func @transform_1(%arg0: i32) -> (i32, i32) {
    %c0_i32 = arith.constant 0 : i32
    %c0_i32_0 = arith.constant 0 : i32
    %c0_i32_1 = arith.constant 0 : i32
    return %c0_i32, %c0_i32_0 : i32, i32
  }
  func.func @transform_2(%arg0: i32) -> (i32, i32) {
    %c0_i32 = arith.constant 0 : i32
    %c0_i32_0 = arith.constant 0 : i32
    %c0_i32_1 = arith.constant 0 : i32
    return %c0_i32, %c0_i32_0 : i32, i32
  }
  func.func @transform_3(%arg0: i32) -> (i32, i32) {
    %c0_i32 = arith.constant 0 : i32
    %c0_i32_0 = arith.constant 0 : i32
    return %arg0, %c0_i32 : i32, i32
  }
}

</mosaic_0001>

<llo_original>
// kernel: tpu_custom_call.1
$region0: #{tpu_custom_call.1}
  #allocation0 [shape = 'u32[]', space=smem, size = 0x4, offset = 0x4, fixed_abs, tag = 'smem constant byte address 0x4 - core index']
  #allocation1 [shape = 'u32[144,128]{1,0:T(1,128)}', space=vmem, size = 0x12000, scoped, tag = 'internal scratch']
  %s0 = inlined_call_operand.vmem [shape: f32[8,32], index: 0, kind: input, shape index: {}]
  %s1 = inlined_call_operand.vmem [shape: f32[32,16], index: 1, kind: input, shape index: {}]
  %s2 = inlined_call_operand.vmem [shape: f32[1,16], index: 2, kind: input, shape index: {}]
  %s3 = inlined_call_operand.hbm [shape: f32[8,16], index: 3, kind: output, shape index: {}]
  %s4 = sld [smem:[#allocation0]]
  $region22: #{tpu_custom_call.1} parent=0
    _
  %s6 = ssub.s32 1, %s4
  %s7 = scalar_select 0, %s6, %s4
  $region1: #{tpu_custom_call.1} parent=0
    #allocation2 [shape = 'u8[8192]{0}', space=vmem, size = 0x2000, scoped, tag = 'output window, operand 0, single buffered']
    #allocation3 [shape = 's32[1]{0}', space=sflag, size = 0x4, scoped, tag = 'scoped memory for tpu_custom_call.1']
    %8 = vsyncpa [#allocation3], 0
    // Predicated region
    $region2: #{tpu_custom_call.1} parent=1 // pred_check
      _
    $region3: #{tpu_custom_call.1} parent=1 // pred_check_branch
      %10 = sbr.rel (0) target = $region5
    $region4: #{tpu_custom_call.1} parent=1 // pred_region
      _
    $region5: #{tpu_custom_call.1} parent=1 // pred_fallthru
      _
    // Predicated region
    $region6: #{tpu_custom_call.1} parent=1 // pred_check
      _
    $region7: #{tpu_custom_call.1} parent=1 // pred_check_branch
      %12 = sbr.rel (0) target = $region9
    $region8: #{tpu_custom_call.1} parent=1 // pred_region
      _
    $region9: #{tpu_custom_call.1} parent=1 // pred_fallthru
      _
    // Predicated region
    $region10: #{tpu_custom_call.1} parent=1 // pred_check
      _
    $region11: #{tpu_custom_call.1} parent=1 // pred_check_branch
      %14 = sbr.rel (0) target = $region13
    $region12: #{tpu_custom_call.1} parent=1 // pred_region
      _
    $region13: #{tpu_custom_call.1} parent=1 // pred_fallthru
      _
    %v15 = vld [vmem:[%s0] sm:$0xff]
    %v16 = vld [vmem:[%s0 + $0x8] sm:$0xff]
    %v17 = vld [vmem:[%s1] sm:$0xff]
    %v18 = vld [vmem:[%s1 + $0x8] sm:$0xff]
    %v19 = vld [vmem:[%s1 + $0x10] sm:$0xff]
    %v20 = vld [vmem:[%s1 + $0x18] sm:$0xff]
    %v21 = vld [vmem:[%s2] sm:$0x1]
    %v23 = vlaneseq
    %v24 = vshrl.u32 %v23, 7
    %v25 = vsub.s32 0, %v24
    %v26 = vrot.slane %v21, %v25
    %vm28 = vcmask 261120
    %v30 = vsel %vm28, %v15, 0
    %v33 = vsel %vm28, %v16, 0
    %35 = vmatprep.subr.mxu0 0.0
    %36 = vmatpush1.msra.mxu0 %v17
    %37 = vmatprep.subr.mxu0 0.0
    %38 = vmatpush1.msra.mxu0 %v18
    %39 = vmatprep.subr.mxu0 0.0
    %40 = vmatpush1.msra.mxu0 %v19
    %41 = vmatprep.subr.mxu0 0.0
    %42 = vmatpush1.msra.mxu0 %v20
    %43 = vmatprep.subr.mxu0 0.0
    %44 = vmatpush1.msra.mxu0 0.0
    %45 = vmatprep.subr.mxu0 0.0
    %46 = vmatpush1.msra.mxu0 0.0
    %47 = vmatprep.subr.mxu0 0.0
    %48 = vmatpush1.msra.mxu0 0.0
    %49 = vmatprep.subr.mxu0 0.0
    %50 = vmatpush1.msra.mxu0 0.0
    %51 = vmatprep.subr.mxu0 0.0
    %52 = vmatpush1.msra.mxu0 0.0
    %53 = vmatprep.subr.mxu0 0.0
    %54 = vmatpush1.msra.mxu0 0.0
    %55 = vmatprep.subr.mxu0 0.0
    %56 = vmatpush1.msra.mxu0 0.0
    %57 = vmatprep.subr.mxu0 0.0
    %58 = vmatpush1.msra.mxu0 0.0
    %59 = vmatprep.subr.mxu0 0.0
    %60 = vmatpush1.msra.mxu0 0.0
    %61 = vmatprep.subr.mxu0 0.0
    %62 = vmatpush1.msra.mxu0 0.0
    %63 = vmatprep.subr.mxu0 0.0
    %64 = vmatpush1.msra.mxu0 0.0
    %65 = vmatprep.subr.mxu0 0.0
    %66 = vmatpush1.msra.mxu0 0.0
    %67 = vmatprep.subr.mxu0 0.0
    %68 = vmatpush1.msra.mxu0 0.0
    %69 = vmatprep.subr.mxu0 0.0
    %70 = vmatpush1.msra.mxu0 0.0
    %71 = vmatprep.subr.mxu0 0.0
    %72 = vmatpush1.msra.mxu0 0.0
    %73 = vmatprep.subr.mxu0 0.0
    %74 = vmatpush1.msra.mxu0 0.0
    %75 = vmatprep.subr.mxu0 0.0
    %76 = vmatpush1.msra.mxu0 0.0
    %77 = vmatprep.subr.mxu0 0.0
    %78 = vmatpush1.msra.mxu0 0.0
    %79 = vmatprep.subr.mxu0 0.0
    %80 = vmatpush1.msra.mxu0 0.0
    %81 = vmatprep.subr.mxu0 0.0
    %82 = vmatpush1.msra.mxu0 0.0
    %83 = vmatprep.subr.mxu0 0.0
    %84 = vmatpush1.msra.mxu0 0.0
    %85 = vmatprep.subr.mxu0 0.0
    %86 = vmatpush1.msra.mxu0 0.0
    %87 = vmatprep.subr.mxu0 0.0
    %88 = vmatpush1.msra.mxu0 0.0
    %89 = vmatprep.subr.mxu0 0.0
    %90 = vmatpush1.msra.mxu0 0.0
    %91 = vmatprep.subr.mxu0 0.0
    %92 = vmatpush1.msra.mxu0 0.0
    %93 = vmatprep.subr.mxu0 0.0
    %94 = vmatpush1.msra.mxu0 0.0
    %95 = vmatprep.subr.mxu0 0.0
    %96 = vmatpush1.msra.mxu0 0.0
    %97 = vmatprep.subr.mxu0 0.0
    %98 = vmatpush1.msra.mxu0 0.0
    %99 = vmatprep.mubr.f32.mxu0 0.0
    %100 = vmatmul.mubr.f32.gmra.mrb[0].mxu0 %v30
    %v101 = vpop.f32.mrb[0].mxu0
    %v102 = vadd.f32 %v26, %v101
    %v103 = vpop.f32.mrb[0].mxu0
    %104 = vmatprep.mubr.f32.mxu0 0.0
    %105 = vmatmul.mubr.f32.gmra.mrb[0].mxu0 %v33
    %v106 = vpop.f32.mrb[0].mxu0
    %v107 = vadd.f32 %v26, %v106
    %v108 = vpop.f32.mrb[0].mxu0
    %109 = vdwg.mxu0
    %vm110 = vcmask 130048
    %v111 = vsel %vm110, %v102, -inf
    %112 = vmax.xlane.f32.xlu0 %v111
    %v113 = vpop.xlane.xlu0 %112
    %v114 = vsel %vm110, %v107, -inf
    %115 = vmax.xlane.f32.xlu0 %v114
    %v116 = vpop.xlane.xlu0 %115
    %v117 = vsub.f32 %v102, %v113
    %v118 = vsub.f32 %v107, %v116
    %v119 = vmul.f32 %v117, 1.442695
    %v120 = vpow.pop %v119
    %v121 = vmul.f32 %v118, 1.442695
    %v122 = vpow.pop %v121
    %v123 = vsel %vm110, %v120, 0.0
    %124 = vadd.xlane.f32.xlu0 %v123
    %v125 = vpop.xlane.xlu0 %124
    %v126 = vsel %vm110, %v122, 0.0
    %127 = vadd.xlane.f32.xlu0 %v126
    %v128 = vpop.xlane.xlu0 %127
    %v129 = vrcp.pop %v125
    %v130 = vmul.f32 %v120, %v129
    %v131 = vrcp.pop %v128
    %v132 = vmul.f32 %v122, %v131
    %133 = vst.msk [vmem:[#allocation2] sm:$0xff] %vm110, %v130
    %134 = vst.msk [vmem:[#allocation2 + $0x8] sm:$0xff] %vm110, %v132
    // Predicated region
    $region14: #{tpu_custom_call.1} parent=1 // pred_check
      _
    $region15: #{tpu_custom_call.1} parent=1 // pred_check_branch
      %136 = sbr.rel (0) target = $region17
    $region16: #{tpu_custom_call.1} parent=1 // pred_region
      %s138 = ssub.s32 256, 128
      %139 = vsyncadd [#allocation3], %s138
      %s140 = sshll.u32 [#allocation2], 4
      %s141 = int_to_ptr.vmem [resolvable:$true] %s140
      %146 = dma.vmem_to_hbm [thread:$0]  %s141, 128, %s3, [#allocation3], 128, 128, 8
    $region17: #{tpu_custom_call.1} parent=1 // pred_fallthru
      _
    // Predicated region
    $region18: #{tpu_custom_call.1} parent=1 // pred_check
      _
    $region19: #{tpu_custom_call.1} parent=1 // pred_check_branch
      %148 = sbr.rel (0) target = $region21
    $region20: #{tpu_custom_call.1} parent=1 // pred_region
      %149 = dma.done [#allocation3], 256
    $region21: #{tpu_custom_call.1} parent=1 // pred_fallthru
      _
    %150 = vsyncpa [#allocation3], 1

</llo_original>
